<compile_context>
chip_gen: v7x
topology: tpu7x:2x2x1
jax: 0.10.0
libtpu: 0.0.40
codegen_flags: <defaults>
</compile_context>

<pallas_src>
import jax
import jax.numpy as jnp
from jax import lax
from jax.experimental import pallas as pl
from jax.experimental.pallas import tpu as pltpu

BN_EPS = 1e-5  # torch.nn.BatchNorm1d default


# --------------------------------------------------------------------------------------
# Kernel
# --------------------------------------------------------------------------------------
def make_mlp_kernel(n_hidden: int):
    """Fused (BN-folded) MLP kernel: n_hidden x (Linear -> ReLU), then final Linear."""
    if n_hidden == 0:
        def kernel(x_ref, wf_ref, bf_ref, o_ref):
            acc = jnp.dot(x_ref[...], wf_ref[...], preferred_element_type=jnp.float32)
            o_ref[...] = (acc + bf_ref[...]).astype(o_ref.dtype)

        return kernel

    def kernel(x_ref, w_ref, b_ref, wf_ref, bf_ref, o_ref):
        cdt = x_ref.dtype            # bf16 matmul operands
        h = x_ref[...]               # (tb, dpad) bf16
        for li in range(n_hidden):   # static unroll over layers
            acc = jnp.dot(h, w_ref[li], preferred_element_type=jnp.float32)  # f32 acc
            h = jnp.maximum(acc + b_ref[li], 0.0).astype(cdt)  # f32 epilogue, bf16 out
        acc = jnp.dot(h, wf_ref[...], preferred_element_type=jnp.float32)
        o_ref[...] = (acc + bf_ref[...]).astype(o_ref.dtype)

    return kernel


# --------------------------------------------------------------------------------------
# Parameter construction / folding helpers
# --------------------------------------------------------------------------------------
def init_transition_predictor_params(key, z_dim, z_layers, hidden_sizes):
    """Deterministic synthetic parameters (shapes match the torch module)."""
    d = z_dim * z_layers
    sizes = [d] + list(hidden_sizes) + [d]
    params = {"hidden": [], "final": None}
    for li, (h0, h1) in enumerate(zip(sizes, sizes[1:])):
        key, kw, kb, kg, kbe, km = jax.random.split(key, 6)
        w = jax.random.normal(kw, (h0, h1), jnp.float32) * (1.0 / jnp.sqrt(h0))
        b = jax.random.normal(kb, (1, h1), jnp.float32) * 0.01
        if li < len(sizes) - 2:  # hidden layer: Linear + BN (+ Dropout + ReLU)
            gamma = 1.0 + 0.1 * jax.random.normal(kg, (1, h1), jnp.float32)
            beta = 0.05 * jax.random.normal(kbe, (1, h1), jnp.float32)
            run_mean = 0.02 * jax.random.normal(km, (1, h1), jnp.float32)
            run_var = jnp.ones((1, h1), jnp.float32)
            params["hidden"].append((w, b, gamma, beta, run_mean, run_var))
        else:  # final Linear (BN / Dropout / ReLU popped off in the module)
            params["final"] = (w, b)
    return params


def _fold_bn(hidden_params):
    """Fold eval-mode BatchNorm into the preceding Linear (exact up to rounding)."""
    folded = []
    for (w, b, g, be, m, v) in hidden_params:
        s = g * lax.rsqrt(v + BN_EPS)                 # (1, h1)
        folded.append((w * s, (b - m) * s + be))      # W' (h0, h1), b' (1, h1)
    return folded


def _round_up(x, m):
    return ((x + m - 1) // m) * m


def _pad2(a, rows, cols):
    return jnp.pad(a, ((0, rows - a.shape[0]), (0, cols - a.shape[1])))


# --------------------------------------------------------------------------------------
# Wrapper
# --------------------------------------------------------------------------------------
def transition_predictor_forward(x, params, z_dim, z_layers, *, allow_fallback=True):
    """Matches TransitionPredictor.forward (eval mode)."""
    B = x.shape[0]
    x2 = x.reshape(B, -1).astype(jnp.float32)          # x.view(x.shape[0], -1)
    d_in = x2.shape[1]
    d_out = z_dim * z_layers
    hidden = params["hidden"]
    n_hidden = len(hidden)
    wf, bf = params["final"]

    folded = _fold_bn(hidden)

    # Lane-padded common hidden width and output width (multiples of 128).
    dmax = max([d_in] + [w.shape[1] for w, _ in folded]) if n_hidden else d_in
    dpad = _round_up(dmax, 128)
    opad = _round_up(d_out, 128)

    # Batch tile: multiple of 8; >=2 "parallel" grid steps for moderate B (v7x megacore).
    tb = min(512, max(8, _round_up(pl.cdiv(B, 2), 8)))
    bp = _round_up(B, tb)
    n_steps = bp // tb

    # VMEM budget: single-buffered weight/bias stacks + double-buffered x/out tiles.
    wstack_bytes = n_hidden * dpad * dpad * 2 + dpad * opad * 2   # bf16 weights
    bias_bytes = (n_hidden * dpad + opad) * 4                     # f32 biases
    tile_bytes = 2 * (tb * dpad * 2) + 2 * (tb * opad * 4)        # x (bf16) + out (f32)
    needed = wstack_bytes + bias_bytes + tile_bytes
    vmem_limit = int(min(max(needed + (4 << 20), 16 << 20), 48 << 20))

    weights_fit = (needed + (4 << 20)) <= (48 << 20)
    small_problem = (n_steps == 1) and (dpad <= 128)

    if (small_problem or not weights_fit) and allow_fallback:
        # Overhead-bound tiny problems / over-budget weight stacks: plain XLA is better.
        # TODO(synk): replace the over-budget branch with a K-tiled inner pipeline.
        h = x2
        for w, b in folded:
            h = jnp.maximum(h @ w + b, 0.0)
        return (h @ wf + bf).reshape(-1, z_layers, z_dim)
    if not weights_fit:
        raise ValueError("Folded weight stack exceeds the VMEM budget; "
                         "enable allow_fallback or reduce hidden sizes.")

    cdt = jnp.bfloat16
    x_p = _pad2(x2, bp, dpad).astype(cdt)
    wf_p = _pad2(wf, dpad, opad).astype(cdt)
    bf_p = _pad2(bf, 1, opad)                                     # f32

    def _const_spec(shape, single_buffer):
        idx = {2: (lambda i: (0, 0)), 3: (lambda i: (0, 0, 0))}[len(shape)]
        if single_buffer:
            return pl.BlockSpec(shape, idx, pipeline_mode=pl.Buffered(1))
        return pl.BlockSpec(shape, idx)

    def _run(single_buffer):
        flat_args = [x_p]
        in_specs = [pl.BlockSpec((tb, dpad), lambda i: (i, 0))]
        if n_hidden:
            w_stack = jnp.stack([_pad2(w, dpad, dpad) for w, _ in folded]).astype(cdt)
            b_stack = jnp.stack([_pad2(b, 1, dpad) for _, b in folded])   # f32
            flat_args += [w_stack, b_stack]
            in_specs += [_const_spec(w_stack.shape, single_buffer),
                         _const_spec(b_stack.shape, single_buffer)]
        flat_args += [wf_p, bf_p]
        in_specs += [_const_spec(wf_p.shape, single_buffer),
                     _const_spec(bf_p.shape, single_buffer)]

        flops = 2 * bp * (n_hidden * dpad * dpad + dpad * opad)
        bytes_accessed = sum(int(a.size) * a.dtype.itemsize for a in flat_args) \
            + bp * opad * 4
        ce = pl.CostEstimate(flops=flops, transcendentals=0,
                             bytes_accessed=bytes_accessed)

        return pl.pallas_call(
            make_mlp_kernel(n_hidden),
            out_shape=jax.ShapeDtypeStruct((bp, opad), jnp.float32),
            grid=(n_steps,),
            in_specs=in_specs,
            out_specs=pl.BlockSpec((tb, opad), lambda i: (i, 0)),
            compiler_params=pltpu.CompilerParams(
                dimension_semantics=("parallel",),
                vmem_limit_bytes=vmem_limit,
            ),
            cost_estimate=ce,
        )(*flat_args)

    try:
        out = jax.block_until_ready(_run(single_buffer=True))
    except Exception:
        # pl.Buffered(1) not supported by this Pallas build -> default double buffering.
        out = jax.block_until_ready(_run(single_buffer=False))

    return out[:B, :d_out].reshape(-1, z_layers, z_dim)  # .view(-1, z_layers, z_dim)


# --------------------------------------------------------------------------------------
# References
# --------------------------------------------------------------------------------------
def reference_forward_f32(x, params):
    """Pure-JAX f32 reference of the eval-mode forward (un-folded BN)."""
    B = x.shape[0]
    h = x.reshape(B, -1).astype(jnp.float32)
    for (w, b, g, be, m, v) in params["hidden"]:
        h = h @ w + b
        h = (h - m) / jnp.sqrt(v + BN_EPS) * g + be
        h = jnp.maximum(h, 0.0)
    wf, bf = params["final"]
    return h @ wf + bf


def reference_forward_bf16(x, params):
    """Reference with the kernel's exact precision recipe (bf16 operands, f32 acc)."""
    B = x.shape[0]
    h = x.reshape(B, -1).astype(jnp.float32).astype(jnp.bfloat16)
    for w, b in _fold_bn(params["hidden"]):
        acc = jnp.dot(h, w.astype(jnp.bfloat16), preferred_element_type=jnp.float32)
        h = jnp.maximum(acc + b, 0.0).astype(jnp.bfloat16)
    wf, bf = params["final"]
    return jnp.dot(h, wf.astype(jnp.bfloat16), preferred_element_type=jnp.float32) + bf


# --------------------------------------------------------------------------------------
if __name__ == "__main__":
    z_dim = 8
    z_layers = 4
    hidden_sizes = [32, 32]
    batch = 8

    key = jax.random.PRNGKey(0)
    kx, kp = jax.random.split(key)
    x = jax.random.normal(kx, (batch, z_layers, z_dim), jnp.float32)
    params = init_transition_predictor_params(kp, z_dim, z_layers, hidden_sizes)

    # allow_fallback=False forces the Pallas kernel even for this tiny demo problem.
    out = transition_predictor_forward(x, params, z_dim, z_layers, allow_fallback=False)
    out = jax.block_until_ready(out)
    assert out.shape == (batch, z_layers, z_dim), out.shape

    # Exact-recipe check (same bf16/f32 math as the kernel).
    ref_bf16 = reference_forward_bf16(x, params).reshape(-1, z_layers, z_dim)
    assert jnp.allclose(out, ref_bf16, atol=5e-3, rtol=5e-3), float(
        jnp.max(jnp.abs(out - ref_bf16)))

    # Loose sanity check against the pure-f32 eval-mode reference (bf16 rounding only).
    ref_f32 = reference_forward_f32(x, params).reshape(-1, z_layers, z_dim)
    assert jnp.max(jnp.abs(out - ref_f32)) < 0.25, float(jnp.max(jnp.abs(out - ref_f32)))

    print("KERNEL_OK")
</pallas_src>

<mosaic_0001>
module attributes {stable_mosaic.version = 11 : i64} {
  func.func @kernel(%arg0: i32, %arg1: memref<8x128xbf16, #tpu.memory_space<vmem>>, %arg2: memref<2x128x128xbf16, #tpu.memory_space<vmem>>, %arg3: memref<2x1x128xf32, #tpu.memory_space<vmem>>, %arg4: memref<128x128xbf16, #tpu.memory_space<vmem>>, %arg5: memref<1x128xf32, #tpu.memory_space<vmem>>, %arg6: memref<8x128xf32, #tpu.memory_space<vmem>>) attributes {dimension_semantics = [#tpu.dimension_semantics<parallel>], iteration_bounds = array<i64: 1>, scalar_prefetch = 0 : i64, scratch_operands = 0 : i64, tpu.core_type = #tpu.core_type<tc>, window_params = [{transform_indices = @transform_0, window_bounds = array<i64: 8, 128>}, {pipeline_mode = #tpu.pipeline_mode<synchronous>, transform_indices = @transform_1, window_bounds = array<i64: 2, 128, 128>}, {pipeline_mode = #tpu.pipeline_mode<synchronous>, transform_indices = @transform_2, window_bounds = array<i64: 2, 1, 128>}, {pipeline_mode = #tpu.pipeline_mode<synchronous>, transform_indices = @transform_3, window_bounds = array<i64: 128, 128>}, {pipeline_mode = #tpu.pipeline_mode<synchronous>, transform_indices = @transform_4, window_bounds = array<i64: 1, 128>}, {transform_indices = @transform_5, window_bounds = array<i64: 8, 128>}]} {
    %c0 = arith.constant 0 : index
    %c0_0 = arith.constant 0 : index
    %0 = vector.load %arg1[%c0, %c0_0] : memref<8x128xbf16, #tpu.memory_space<vmem>>, vector<8x128xbf16>
    %c0_1 = arith.constant 0 : index
    %c0_2 = arith.constant 0 : index
    %c0_3 = arith.constant 0 : index
    %1 = vector.load %arg2[%c0_1, %c0_2, %c0_3] : memref<2x128x128xbf16, #tpu.memory_space<vmem>>, vector<1x128x128xbf16>
    %2 = vector.shape_cast %1 : vector<1x128x128xbf16> to vector<128x128xbf16>
    %cst = arith.constant dense<0.000000e+00> : vector<8x128xf32>
    %3 = tpu.matmul %0, %2, %cst {dimension_numbers = #tpu.dot_dimension_numbers<[1], [0], [0], [1], [0, 0, 1, 1], [], []>} : vector<8x128xbf16>, vector<128x128xbf16>, vector<8x128xf32> -> vector<8x128xf32>
    %c0_4 = arith.constant 0 : index
    %c0_5 = arith.constant 0 : index
    %c0_6 = arith.constant 0 : index
    %4 = vector.load %arg3[%c0_4, %c0_5, %c0_6] : memref<2x1x128xf32, #tpu.memory_space<vmem>>, vector<1x1x128xf32>
    %5 = vector.shape_cast %4 : vector<1x1x128xf32> to vector<1x128xf32>
    %6 = vector.broadcast %5 : vector<1x128xf32> to vector<8x128xf32>
    %7 = arith.addf %3, %6 : vector<8x128xf32>
    %cst_7 = arith.constant 0.000000e+00 : f32
    %8 = vector.broadcast %cst_7 : f32 to vector<8x128xf32>
    %9 = arith.maximumf %7, %8 : vector<8x128xf32>
    %10 = arith.truncf %9 : vector<8x128xf32> to vector<8x128xbf16>
    %c1 = arith.constant 1 : index
    %c0_8 = arith.constant 0 : index
    %c0_9 = arith.constant 0 : index
    %11 = vector.load %arg2[%c1, %c0_8, %c0_9] : memref<2x128x128xbf16, #tpu.memory_space<vmem>>, vector<1x128x128xbf16>
    %12 = vector.shape_cast %11 : vector<1x128x128xbf16> to vector<128x128xbf16>
    %cst_10 = arith.constant dense<0.000000e+00> : vector<8x128xf32>
    %13 = tpu.matmul %10, %12, %cst_10 {dimension_numbers = #tpu.dot_dimension_numbers<[1], [0], [0], [1], [0, 0, 1, 1], [], []>} : vector<8x128xbf16>, vector<128x128xbf16>, vector<8x128xf32> -> vector<8x128xf32>
    %c1_11 = arith.constant 1 : index
    %c0_12 = arith.constant 0 : index
    %c0_13 = arith.constant 0 : index
    %14 = vector.load %arg3[%c1_11, %c0_12, %c0_13] : memref<2x1x128xf32, #tpu.memory_space<vmem>>, vector<1x1x128xf32>
    %15 = vector.shape_cast %14 : vector<1x1x128xf32> to vector<1x128xf32>
    %16 = vector.broadcast %15 : vector<1x128xf32> to vector<8x128xf32>
    %17 = arith.addf %13, %16 : vector<8x128xf32>
    %cst_14 = arith.constant 0.000000e+00 : f32
    %18 = vector.broadcast %cst_14 : f32 to vector<8x128xf32>
    %19 = arith.maximumf %17, %18 : vector<8x128xf32>
    %20 = arith.truncf %19 : vector<8x128xf32> to vector<8x128xbf16>
    %c0_15 = arith.constant 0 : index
    %c0_16 = arith.constant 0 : index
    %21 = vector.load %arg4[%c0_15, %c0_16] : memref<128x128xbf16, #tpu.memory_space<vmem>>, vector<128x128xbf16>
    %cst_17 = arith.constant dense<0.000000e+00> : vector<8x128xf32>
    %22 = tpu.matmul %20, %21, %cst_17 {dimension_numbers = #tpu.dot_dimension_numbers<[1], [0], [0], [1], [0, 0, 1, 1], [], []>} : vector<8x128xbf16>, vector<128x128xbf16>, vector<8x128xf32> -> vector<8x128xf32>
    %c0_18 = arith.constant 0 : index
    %c0_19 = arith.constant 0 : index
    %23 = vector.load %arg5[%c0_18, %c0_19] : memref<1x128xf32, #tpu.memory_space<vmem>>, vector<1x128xf32>
    %24 = vector.broadcast %23 : vector<1x128xf32> to vector<8x128xf32>
    %25 = arith.addf %22, %24 : vector<8x128xf32>
    %c0_20 = arith.constant 0 : index
    %c0_21 = arith.constant 0 : index
    %26 = vector.load %arg6[%c0_20, %c0_21] : memref<8x128xf32, #tpu.memory_space<vmem>>, vector<8x128xf32>
    tpu.vector_store %arg6[%c0_20, %c0_21], %25 {strides = array<i32>} : memref<8x128xf32, #tpu.memory_space<vmem>>, vector<8x128xf32>,
    return
  }
  func.func @transform_0(%arg0: i32) -> (i32, i32) {
    %c0_i32 = arith.constant 0 : i32
    %c0_i32_0 = arith.constant 0 : i32
    return %arg0, %c0_i32 : i32, i32
  }
  func.func @transform_1(%arg0: i32) -> (i32, i32, i32) {
    %c0_i32 = arith.constant 0 : i32
    %c0_i32_0 = arith.constant 0 : i32
    %c0_i32_1 = arith.constant 0 : i32
    %c0_i32_2 = arith.constant 0 : i32
    return %c0_i32, %c0_i32_0, %c0_i32_1 : i32, i32, i32
  }
  func.func @transform_2(%arg0: i32) -> (i32, i32, i32) {
    %c0_i32 = arith.constant 0 : i32
    %c0_i32_0 = arith.constant 0 : i32
    %c0_i32_1 = arith.constant 0 : i32
    %c0_i32_2 = arith.constant 0 : i32
    return %c0_i32, %c0_i32_0, %c0_i32_1 : i32, i32, i32
  }
  func.func @transform_3(%arg0: i32) -> (i32, i32) {
    %c0_i32 = arith.constant 0 : i32
    %c0_i32_0 = arith.constant 0 : i32
    %c0_i32_1 = arith.constant 0 : i32
    return %c0_i32, %c0_i32_0 : i32, i32
  }
  func.func @transform_4(%arg0: i32) -> (i32, i32) {
    %c0_i32 = arith.constant 0 : i32
    %c0_i32_0 = arith.constant 0 : i32
    %c0_i32_1 = arith.constant 0 : i32
    return %c0_i32, %c0_i32_0 : i32, i32
  }
  func.func @transform_5(%arg0: i32) -> (i32, i32) {
    %c0_i32 = arith.constant 0 : i32
    %c0_i32_0 = arith.constant 0 : i32
    return %arg0, %c0_i32 : i32, i32
  }
}

module attributes {stable_mosaic.version = 11 : i64} {
  func.func @kernel(%arg0: i32, %arg1: memref<8x128xbf16, #tpu.memory_space<vmem>>, %arg2: memref<2x128x128xbf16, #tpu.memory_space<vmem>>, %arg3: memref<2x1x128xf32, #tpu.memory_space<vmem>>, %arg4: memref<128x128xbf16, #tpu.memory_space<vmem>>, %arg5: memref<1x128xf32, #tpu.memory_space<vmem>>, %arg6: memref<8x128xf32, #tpu.memory_space<vmem>>) attributes {dimension_semantics = [#tpu.dimension_semantics<parallel>], iteration_bounds = array<i64: 1>, scalar_prefetch = 0 : i64, scratch_operands = 0 : i64, tpu.core_type = #tpu.core_type<tc>, window_params = [{transform_indices = @transform_0, window_bounds = array<i64: 8, 128>}, {pipeline_mode = #tpu.pipeline_mode<synchronous>, transform_indices = @transform_1, window_bounds = array<i64: 2, 128, 128>}, {pipeline_mode = #tpu.pipeline_mode<synchronous>, transform_indices = @transform_2, window_bounds = array<i64: 2, 1, 128>}, {pipeline_mode = #tpu.pipeline_mode<synchronous>, transform_indices = @transform_3, window_bounds = array<i64: 128, 128>}, {pipeline_mode = #tpu.pipeline_mode<synchronous>, transform_indices = @transform_4, window_bounds = array<i64: 1, 128>}, {transform_indices = @transform_5, window_bounds = array<i64: 8, 128>}]} {
    %c0 = arith.constant 0 : index
    %c0_0 = arith.constant 0 : index
    %0 = vector.load %arg1[%c0, %c0_0] : memref<8x128xbf16, #tpu.memory_space<vmem>>, vector<8x128xbf16>
    %c0_1 = arith.constant 0 : index
    %c0_2 = arith.constant 0 : index
    %c0_3 = arith.constant 0 : index
    %1 = vector.load %arg2[%c0_1, %c0_2, %c0_3] : memref<2x128x128xbf16, #tpu.memory_space<vmem>>, vector<1x128x128xbf16>
    %2 = vector.shape_cast %1 : vector<1x128x128xbf16> to vector<128x128xbf16>
    %cst = arith.constant dense<0.000000e+00> : vector<8x128xf32>
    %3 = tpu.matmul %0, %2, %cst {dimension_numbers = #tpu.dot_dimension_numbers<[1], [0], [0], [1], [0, 0, 1, 1], [], []>} : vector<8x128xbf16>, vector<128x128xbf16>, vector<8x128xf32> -> vector<8x128xf32>
    %c0_4 = arith.constant 0 : index
    %c0_5 = arith.constant 0 : index
    %c0_6 = arith.constant 0 : index
    %4 = vector.load %arg3[%c0_4, %c0_5, %c0_6] : memref<2x1x128xf32, #tpu.memory_space<vmem>>, vector<1x1x128xf32>
    %5 = vector.shape_cast %4 : vector<1x1x128xf32> to vector<1x128xf32>
    %6 = vector.broadcast %5 : vector<1x128xf32> to vector<8x128xf32>
    %7 = arith.addf %3, %6 : vector<8x128xf32>
    %cst_7 = arith.constant 0.000000e+00 : f32
    %8 = vector.broadcast %cst_7 : f32 to vector<8x128xf32>
    %9 = arith.maximumf %7, %8 : vector<8x128xf32>
    %10 = arith.truncf %9 : vector<8x128xf32> to vector<8x128xbf16>
    %c1 = arith.constant 1 : index
    %c0_8 = arith.constant 0 : index
    %c0_9 = arith.constant 0 : index
    %11 = vector.load %arg2[%c1, %c0_8, %c0_9] : memref<2x128x128xbf16, #tpu.memory_space<vmem>>, vector<1x128x128xbf16>
    %12 = vector.shape_cast %11 : vector<1x128x128xbf16> to vector<128x128xbf16>
    %cst_10 = arith.constant dense<0.000000e+00> : vector<8x128xf32>
    %13 = tpu.matmul %10, %12, %cst_10 {dimension_numbers = #tpu.dot_dimension_numbers<[1], [0], [0], [1], [0, 0, 1, 1], [], []>} : vector<8x128xbf16>, vector<128x128xbf16>, vector<8x128xf32> -> vector<8x128xf32>
    %c1_11 = arith.constant 1 : index
    %c0_12 = arith.constant 0 : index
    %c0_13 = arith.constant 0 : index
    %14 = vector.load %arg3[%c1_11, %c0_12, %c0_13] : memref<2x1x128xf32, #tpu.memory_space<vmem>>, vector<1x1x128xf32>
    %15 = vector.shape_cast %14 : vector<1x1x128xf32> to vector<1x128xf32>
    %16 = vector.broadcast %15 : vector<1x128xf32> to vector<8x128xf32>
    %17 = arith.addf %13, %16 : vector<8x128xf32>
    %cst_14 = arith.constant 0.000000e+00 : f32
    %18 = vector.broadcast %cst_14 : f32 to vector<8x128xf32>
    %19 = arith.maximumf %17, %18 : vector<8x128xf32>
    %20 = arith.truncf %19 : vector<8x128xf32> to vector<8x128xbf16>
    %c0_15 = arith.constant 0 : index
    %c0_16 = arith.constant 0 : index
    %21 = vector.load %arg4[%c0_15, %c0_16] : memref<128x128xbf16, #tpu.memory_space<vmem>>, vector<128x128xbf16>
    %cst_17 = arith.constant dense<0.000000e+00> : vector<8x128xf32>
    %22 = tpu.matmul %20, %21, %cst_17 {dimension_numbers = #tpu.dot_dimension_numbers<[1], [0], [0], [1], [0, 0, 1, 1], [], []>} : vector<8x128xbf16>, vector<128x128xbf16>, vector<8x128xf32> -> vector<8x128xf32>
    %c0_18 = arith.constant 0 : index
    %c0_19 = arith.constant 0 : index
    %23 = vector.load %arg5[%c0_18, %c0_19] : memref<1x128xf32, #tpu.memory_space<vmem>>, vector<1x128xf32>
    %24 = vector.broadcast %23 : vector<1x128xf32> to vector<8x128xf32>
    %25 = arith.addf %22, %24 : vector<8x128xf32>
    %c0_20 = arith.constant 0 : index
    %c0_21 = arith.constant 0 : index
    %26 = vector.load %arg6[%c0_20, %c0_21] : memref<8x128xf32, #tpu.memory_space<vmem>>, vector<8x128xf32>
    tpu.vector_store %arg6[%c0_20, %c0_21], %25 {strides = array<i32>} : memref<8x128xf32, #tpu.memory_space<vmem>>, vector<8x128xf32>,
    return
  }
  func.func @transform_0(%arg0: i32) -> (i32, i32) {
    %c0_i32 = arith.constant 0 : i32
    %c0_i32_0 = arith.constant 0 : i32
    return %arg0, %c0_i32 : i32, i32
  }
  func.func @transform_1(%arg0: i32) -> (i32, i32, i32) {
    %c0_i32 = arith.constant 0 : i32
    %c0_i32_0 = arith.constant 0 : i32
    %c0_i32_1 = arith.constant 0 : i32
    %c0_i32_2 = arith.constant 0 : i32
    return %c0_i32, %c0_i32_0, %c0_i32_1 : i32, i32, i32
  }
  func.func @transform_2(%arg0: i32) -> (i32, i32, i32) {
    %c0_i32 = arith.constant 0 : i32
    %c0_i32_0 = arith.constant 0 : i32
    %c0_i32_1 = arith.constant 0 : i32
    %c0_i32_2 = arith.constant 0 : i32
    return %c0_i32, %c0_i32_0, %c0_i32_1 : i32, i32, i32
  }
  func.func @transform_3(%arg0: i32) -> (i32, i32) {
    %c0_i32 = arith.constant 0 : i32
    %c0_i32_0 = arith.constant 0 : i32
    %c0_i32_1 = arith.constant 0 : i32
    return %c0_i32, %c0_i32_0 : i32, i32
  }
  func.func @transform_4(%arg0: i32) -> (i32, i32) {
    %c0_i32 = arith.constant 0 : i32
    %c0_i32_0 = arith.constant 0 : i32
    %c0_i32_1 = arith.constant 0 : i32
    return %c0_i32, %c0_i32_0 : i32, i32
  }
  func.func @transform_5(%arg0: i32) -> (i32, i32) {
    %c0_i32 = arith.constant 0 : i32
    %c0_i32_0 = arith.constant 0 : i32
    return %arg0, %c0_i32 : i32, i32
  }
}

</mosaic_0001>

<llo_original>
// kernel: tpu_custom_call.1
$region0: #{tpu_custom_call.1}
  #allocation0 [shape = 'u32[]', space=smem, size = 0x4, offset = 0x4, fixed_abs, tag = 'smem constant byte address 0x4 - core index']
  #allocation1 [shape = 'u32[144,128]{1,0:T(1,128)}', space=vmem, size = 0x12000, scoped, tag = 'internal scratch']
  %s0 = inlined_call_operand.hbm [shape: bf16[8,128], index: 0, kind: input, shape index: {}]
  %s1 = inlined_call_operand.hbm [shape: bf16[2,128,128], index: 1, kind: input, shape index: {}]
  %s2 = inlined_call_operand.vmem [shape: f32[2,1,128], index: 2, kind: input, shape index: {}]
  %s3 = inlined_call_operand.hbm [shape: bf16[128,128], index: 3, kind: input, shape index: {}]
  %s4 = inlined_call_operand.vmem [shape: f32[1,128], index: 4, kind: input, shape index: {}]
  %s5 = inlined_call_operand.hbm [shape: f32[8,128], index: 5, kind: output, shape index: {}]
  %s6 = sld [smem:[#allocation0]]
  $region42: #{tpu_custom_call.1} parent=0
    _
  %s8 = ssub.s32 1, %s6
  %s9 = scalar_select 0, %s8, %s6
  $region1: #{tpu_custom_call.1} parent=0
    #allocation2 [shape = 'u8[2048]{0}', space=vmem, size = 0x800, scoped, tag = 'input window, operand 0, single buffered']
    #allocation3 [shape = 's32[1]{0}', space=sflag, size = 0x4, scoped, tag = 'scoped memory for tpu_custom_call.1']
    #allocation4 [shape = 's32[1]{0}', space=sflag, size = 0x4, scoped, tag = 'scoped memory for tpu_custom_call.1']
    #allocation5 [shape = 'u8[65536]{0}', space=vmem, size = 0x10000, scoped, tag = 'input window, operand 1, single buffered']
    #allocation6 [shape = 's32[1]{0}', space=sflag, size = 0x4, scoped, tag = 'scoped memory for tpu_custom_call.1']
    #allocation7 [shape = 'u8[32768]{0}', space=vmem, size = 0x8000, scoped, tag = 'input window, operand 3, single buffered']
    #allocation8 [shape = 'u8[4096]{0}', space=vmem, size = 0x1000, scoped, tag = 'output window, operand 0, single buffered']
    %10 = vsyncpa [#allocation3], 0
    %11 = vsyncpa [#allocation6], 0
    %12 = vsyncpa [#allocation4], 0
    // Predicated region
    $region2: #{tpu_custom_call.1} parent=1 // pred_check
      _
    $region3: #{tpu_custom_call.1} parent=1 // pred_check_branch
      %14 = sbr.rel (0) target = $region5
    $region4: #{tpu_custom_call.1} parent=1 // pred_region
      %s16 = ssub.s32 64, 64
      %17 = vsyncadd [#allocation3], %s16
      %s19 = sshll.u32 [#allocation2], 4
      %s20 = int_to_ptr.vmem [resolvable:$true] %s19
      %22 = dma.hbm_to_vmem [thread:$0]  %s0, 64, %s20, [#allocation3]
    $region5: #{tpu_custom_call.1} parent=1 // pred_fallthru
      _
    // Predicated region
    $region6: #{tpu_custom_call.1} parent=1 // pred_check
      _
    $region7: #{tpu_custom_call.1} parent=1 // pred_check_branch
      %24 = sbr.rel (0) target = $region9
    $region8: #{tpu_custom_call.1} parent=1 // pred_region
      %s26 = ssub.s32 2048, 2048
      %27 = vsyncadd [#allocation6], %s26
      %s28 = sshll.u32 [#allocation5], 4
      %s29 = int_to_ptr.vmem [resolvable:$true] %s28
      %34 = dma.hbm_to_vmem [thread:$0]  %s1, 2048, %s29, [#allocation6], 64, 64, 4
    $region9: #{tpu_custom_call.1} parent=1 // pred_fallthru
      _
    // Predicated region
    $region10: #{tpu_custom_call.1} parent=1 // pred_check
      _
    $region11: #{tpu_custom_call.1} parent=1 // pred_check_branch
      %36 = sbr.rel (0) target = $region13
    $region12: #{tpu_custom_call.1} parent=1 // pred_region
      _
    $region13: #{tpu_custom_call.1} parent=1 // pred_fallthru
      _
    // Predicated region
    $region14: #{tpu_custom_call.1} parent=1 // pred_check
      _
    $region15: #{tpu_custom_call.1} parent=1 // pred_check_branch
      %38 = sbr.rel (0) target = $region17
    $region16: #{tpu_custom_call.1} parent=1 // pred_region
      %s40 = ssub.s32 1024, 1024
      %41 = vsyncadd [#allocation6], %s40
      %s42 = sshll.u32 [#allocation7], 4
      %s43 = int_to_ptr.vmem [resolvable:$true] %s42
      %48 = dma.hbm_to_vmem [thread:$0]  %s3, 1024, %s43, [#allocation6], 64, 64, 4
    $region17: #{tpu_custom_call.1} parent=1 // pred_fallthru
      _
    // Predicated region
    $region18: #{tpu_custom_call.1} parent=1 // pred_check
      _
    $region19: #{tpu_custom_call.1} parent=1 // pred_check_branch
      %50 = sbr.rel (0) target = $region21
    $region20: #{tpu_custom_call.1} parent=1 // pred_region
      _
    $region21: #{tpu_custom_call.1} parent=1 // pred_fallthru
      _
    // Predicated region
    $region22: #{tpu_custom_call.1} parent=1 // pred_check
      _
    $region23: #{tpu_custom_call.1} parent=1 // pred_check_branch
      %52 = sbr.rel (0) target = $region25
    $region24: #{tpu_custom_call.1} parent=1 // pred_region
      %53 = dma.done [#allocation3], 64
    $region25: #{tpu_custom_call.1} parent=1 // pred_fallthru
      _
    // Predicated region
    $region26: #{tpu_custom_call.1} parent=1 // pred_check
      _
    $region27: #{tpu_custom_call.1} parent=1 // pred_check_branch
      %55 = sbr.rel (0) target = $region29
    $region28: #{tpu_custom_call.1} parent=1 // pred_region
      %56 = dma.done [#allocation6], 2048
    $region29: #{tpu_custom_call.1} parent=1 // pred_fallthru
      _
    // Predicated region
    $region30: #{tpu_custom_call.1} parent=1 // pred_check
      _
    $region31: #{tpu_custom_call.1} parent=1 // pred_check_branch
      %58 = sbr.rel (0) target = $region33
    $region32: #{tpu_custom_call.1} parent=1 // pred_region
      %59 = dma.done [#allocation6], 1024
    $region33: #{tpu_custom_call.1} parent=1 // pred_fallthru
      _
    %v61 = vld [vmem:[#allocation2] sm:$0xf]
    %v62 = vld [vmem:[#allocation5] sm:$0xf]
    %v63 = vld [vmem:[#allocation5 + $0x4] sm:$0xf]
    %v64 = vld [vmem:[#allocation5 + $0x8] sm:$0xf]
    %v65 = vld [vmem:[#allocation5 + $0xc] sm:$0xf]
    %v66 = vld [vmem:[#allocation5 + $0x10] sm:$0xf]
    %v67 = vld [vmem:[#allocation5 + $0x14] sm:$0xf]
    %v68 = vld [vmem:[#allocation5 + $0x18] sm:$0xf]
    %v69 = vld [vmem:[#allocation5 + $0x1c] sm:$0xf]
    %v70 = vld [vmem:[#allocation5 + $0x20] sm:$0xf]
    %v71 = vld [vmem:[#allocation5 + $0x24] sm:$0xf]
    %v72 = vld [vmem:[#allocation5 + $0x28] sm:$0xf]
    %v73 = vld [vmem:[#allocation5 + $0x2c] sm:$0xf]
    %v74 = vld [vmem:[#allocation5 + $0x30] sm:$0xf]
    %v75 = vld [vmem:[#allocation5 + $0x34] sm:$0xf]
    %v76 = vld [vmem:[#allocation5 + $0x38] sm:$0xf]
    %v77 = vld [vmem:[#allocation5 + $0x3c] sm:$0xf]
    %v78 = vld [vmem:[%s2] sm:$0x1]
    %v80 = vlaneseq
    %v81 = vshrl.u32 %v80, 7
    %v82 = vsub.s32 0, %v81
    %v83 = vrot.slane %v78, %v82
    %v101 = vunpack.c.l.b16 %v62
    %v102 = vunpack.c.l.b16 %v63
    %v103 = vunpack.c.l.b16 %v64
    %v104 = vunpack.c.l.b16 %v65
    %v105 = vunpack.c.l.b16 %v66
    %v106 = vunpack.c.l.b16 %v67
    %v107 = vunpack.c.l.b16 %v68
    %v108 = vunpack.c.l.b16 %v69
    %v109 = vunpack.c.l.b16 %v70
    %v110 = vunpack.c.l.b16 %v71
    %v111 = vunpack.c.l.b16 %v72
    %v112 = vunpack.c.l.b16 %v73
    %v113 = vunpack.c.l.b16 %v74
    %v114 = vunpack.c.l.b16 %v75
    %v115 = vunpack.c.l.b16 %v76
    %v116 = vunpack.c.l.b16 %v77
    %v117 = vpack.c.b16 %v102, %v101
    %v118 = vpack.c.b16 %v104, %v103
    %v119 = vpack.c.b16 %v106, %v105
    %v120 = vpack.c.b16 %v108, %v107
    %v121 = vpack.c.b16 %v110, %v109
    %v122 = vpack.c.b16 %v112, %v111
    %v123 = vpack.c.b16 %v114, %v113
    %v124 = vpack.c.b16 %v116, %v115
    %133 = vmatprep.subr.bf16.mxu0 0
    %134 = vmatpush1.bf16.msra.mxu0 %v117
    %135 = vmatprep.subr.bf16.mxu0 0
    %136 = vmatpush1.bf16.msra.mxu0 %v118
    %137 = vmatprep.subr.bf16.mxu0 0
    %138 = vmatpush1.bf16.msra.mxu0 %v119
    %139 = vmatprep.subr.bf16.mxu0 0
    %140 = vmatpush1.bf16.msra.mxu0 %v120
    %141 = vmatprep.subr.bf16.mxu0 0
    %142 = vmatpush1.bf16.msra.mxu0 %v121
    %143 = vmatprep.subr.bf16.mxu0 0
    %144 = vmatpush1.bf16.msra.mxu0 %v122
    %145 = vmatprep.subr.bf16.mxu0 0
    %146 = vmatpush1.bf16.msra.mxu0 %v123
    %147 = vmatprep.subr.bf16.mxu0 0
    %148 = vmatpush1.bf16.msra.mxu0 %v124
    %149 = vmatprep.subr.bf16.mxu0 0
    %150 = vmatpush1.bf16.msra.mxu0 0
    %151 = vmatprep.subr.bf16.mxu0 0
    %152 = vmatpush1.bf16.msra.mxu0 0
    %153 = vmatprep.subr.bf16.mxu0 0
    %154 = vmatpush1.bf16.msra.mxu0 0
    %155 = vmatprep.subr.bf16.mxu0 0
    %156 = vmatpush1.bf16.msra.mxu0 0
    %157 = vmatprep.subr.bf16.mxu0 0
    %158 = vmatpush1.bf16.msra.mxu0 0
    %159 = vmatprep.subr.bf16.mxu0 0
    %160 = vmatpush1.bf16.msra.mxu0 0
    %161 = vmatprep.subr.bf16.mxu0 0
    %162 = vmatpush1.bf16.msra.mxu0 0
    %163 = vmatprep.subr.bf16.mxu0 0
    %164 = vmatpush1.bf16.msra.mxu0 0
    %165 = vmatprep.mubr.bf16.mxu0 0
    %166 = vmatmul.mubr.bf16.gmra.mrb[0].mxu0 %v61
    %v167 = vpop.f32.mrb[0].mxu0
    %v168 = vadd.f32 %v83, %v167
    %v169 = vpop.f32.mrb[0].mxu0
    %v170 = vpop.f32.mrb[0].mxu0
    %v171 = vpop.f32.mrb[0].mxu0
    %172 = vdwg.mxu0
    %v173 = vmax.f32 %v168, 0.0
    %v174 = vpack.c.bf16 %v173, %v173
    %s175 = scalar_lea.vmem [#allocation5], 64
    %v176 = vld [vmem:[%s175] sm:$0xf]
    %v177 = vld [vmem:[%s175 + $0x4] sm:$0xf]
    %v178 = vld [vmem:[%s175 + $0x8] sm:$0xf]
    %v179 = vld [vmem:[%s175 + $0xc] sm:$0xf]
    %v180 = vld [vmem:[%s175 + $0x10] sm:$0xf]
    %v181 = vld [vmem:[%s175 + $0x14] sm:$0xf]
    %v182 = vld [vmem:[%s175 + $0x18] sm:$0xf]
    %v183 = vld [vmem:[%s175 + $0x1c] sm:$0xf]
    %v184 = vld [vmem:[%s175 + $0x20] sm:$0xf]
    %v185 = vld [vmem:[%s175 + $0x24] sm:$0xf]
    %v186 = vld [vmem:[%s175 + $0x28] sm:$0xf]
    %v187 = vld [vmem:[%s175 + $0x2c] sm:$0xf]
    %v188 = vld [vmem:[%s175 + $0x30] sm:$0xf]
    %v189 = vld [vmem:[%s175 + $0x34] sm:$0xf]
    %v190 = vld [vmem:[%s175 + $0x38] sm:$0xf]
    %v191 = vld [vmem:[%s175 + $0x3c] sm:$0xf]
    %s192 = scalar_lea.vmem %s2, 1
    %v193 = vld [vmem:[%s192] sm:$0x1]
    %v195 = vlaneseq
    %v196 = vshrl.u32 %v195, 7
    %v197 = vsub.s32 0, %v196
    %v198 = vrot.slane %v193, %v197
    %v216 = vunpack.c.l.b16 %v176
    %v217 = vunpack.c.l.b16 %v177
    %v218 = vunpack.c.l.b16 %v178
    %v219 = vunpack.c.l.b16 %v179
    %v220 = vunpack.c.l.b16 %v180
    %v221 = vunpack.c.l.b16 %v181
    %v222 = vunpack.c.l.b16 %v182
    %v223 = vunpack.c.l.b16 %v183
    %v224 = vunpack.c.l.b16 %v184
    %v225 = vunpack.c.l.b16 %v185
    %v226 = vunpack.c.l.b16 %v186
    %v227 = vunpack.c.l.b16 %v187
    %v228 = vunpack.c.l.b16 %v188
    %v229 = vunpack.c.l.b16 %v189
    %v230 = vunpack.c.l.b16 %v190
    %v231 = vunpack.c.l.b16 %v191
    %v232 = vpack.c.b16 %v217, %v216
    %v233 = vpack.c.b16 %v219, %v218
    %v234 = vpack.c.b16 %v221, %v220
    %v235 = vpack.c.b16 %v223, %v222
    %v236 = vpack.c.b16 %v225, %v224
    %v237 = vpack.c.b16 %v227, %v226
    %v238 = vpack.c.b16 %v229, %v228
    %v239 = vpack.c.b16 %v231, %v230
    %248 = vmatprep.subr.bf16.mxu0 0
    %249 = vmatpush1.bf16.msra.mxu0 %v232
    %250 = vmatprep.subr.bf16.mxu0 0
    %251 = vmatpush1.bf16.msra.mxu0 %v233
    %252 = vmatprep.subr.bf16.mxu0 0
    %253 = vmatpush1.bf16.msra.mxu0 %v234
    %254 = vmatprep.subr.bf16.mxu0 0
    %255 = vmatpush1.bf16.msra.mxu0 %v235
    %256 = vmatprep.subr.bf16.mxu0 0
    %257 = vmatpush1.bf16.msra.mxu0 %v236
    %258 = vmatprep.subr.bf16.mxu0 0
    %259 = vmatpush1.bf16.msra.mxu0 %v237
    %260 = vmatprep.subr.bf16.mxu0 0
    %261 = vmatpush1.bf16.msra.mxu0 %v238
    %262 = vmatprep.subr.bf16.mxu0 0
    %263 = vmatpush1.bf16.msra.mxu0 %v239
    %264 = vmatprep.subr.bf16.mxu0 0
    %265 = vmatpush1.bf16.msra.mxu0 0
    %266 = vmatprep.subr.bf16.mxu0 0
    %267 = vmatpush1.bf16.msra.mxu0 0
    %268 = vmatprep.subr.bf16.mxu0 0
    %269 = vmatpush1.bf16.msra.mxu0 0
    %270 = vmatprep.subr.bf16.mxu0 0
    %271 = vmatpush1.bf16.msra.mxu0 0
    %272 = vmatprep.subr.bf16.mxu0 0
    %273 = vmatpush1.bf16.msra.mxu0 0
    %274 = vmatprep.subr.bf16.mxu0 0
    %275 = vmatpush1.bf16.msra.mxu0 0
    %276 = vmatprep.subr.bf16.mxu0 0
    %277 = vmatpush1.bf16.msra.mxu0 0
    %278 = vmatprep.subr.bf16.mxu0 0
    %279 = vmatpush1.bf16.msra.mxu0 0
    %280 = vmatprep.mubr.bf16.mxu0 0
    %281 = vmatmul.mubr.bf16.gmra.mrb[0].mxu0 %v174
    %v282 = vpop.f32.mrb[0].mxu0
    %v283 = vadd.f32 %v198, %v282
    %v284 = vpop.f32.mrb[0].mxu0
    %v285 = vpop.f32.mrb[0].mxu0
    %v286 = vpop.f32.mrb[0].mxu0
    %287 = vdwg.mxu0
    %v288 = vmax.f32 %v283, 0.0
    %v289 = vpack.c.bf16 %v288, %v288
    %v290 = vld [vmem:[#allocation7] sm:$0xf]
    %v291 = vld [vmem:[#allocation7 + $0x4] sm:$0xf]
    %v292 = vld [vmem:[#allocation7 + $0x8] sm:$0xf]
    %v293 = vld [vmem:[#allocation7 + $0xc] sm:$0xf]
    %v294 = vld [vmem:[#allocation7 + $0x10] sm:$0xf]
    %v295 = vld [vmem:[#allocation7 + $0x14] sm:$0xf]
    %v296 = vld [vmem:[#allocation7 + $0x18] sm:$0xf]
    %v297 = vld [vmem:[#allocation7 + $0x1c] sm:$0xf]
    %v298 = vld [vmem:[#allocation7 + $0x20] sm:$0xf]
    %v299 = vld [vmem:[#allocation7 + $0x24] sm:$0xf]
    %v300 = vld [vmem:[#allocation7 + $0x28] sm:$0xf]
    %v301 = vld [vmem:[#allocation7 + $0x2c] sm:$0xf]
    %v302 = vld [vmem:[#allocation7 + $0x30] sm:$0xf]
    %v303 = vld [vmem:[#allocation7 + $0x34] sm:$0xf]
    %v304 = vld [vmem:[#allocation7 + $0x38] sm:$0xf]
    %v305 = vld [vmem:[#allocation7 + $0x3c] sm:$0xf]
    %v306 = vld [vmem:[%s4] sm:$0x1]
    %v308 = vlaneseq
    %v309 = vshrl.u32 %v308, 7
    %v310 = vsub.s32 0, %v309
    %v311 = vrot.slane %v306, %v310
    %v329 = vunpack.c.l.b16 %v290
    %v330 = vunpack.c.l.b16 %v291
    %v331 = vunpack.c.l.b16 %v292
    %v332 = vunpack.c.l.b16 %v293
    %v333 = vunpack.c.l.b16 %v294
    %v334 = vunpack.c.l.b16 %v295
    %v335 = vunpack.c.l.b16 %v296
    %v336 = vunpack.c.l.b16 %v297
    %v337 = vunpack.c.l.b16 %v298
    %v338 = vunpack.c.l.b16 %v299
    %v339 = vunpack.c.l.b16 %v300
    %v340 = vunpack.c.l.b16 %v301
    %v341 = vunpack.c.l.b16 %v302
    %v342 = vunpack.c.l.b16 %v303
    %v343 = vunpack.c.l.b16 %v304
    %v344 = vunpack.c.l.b16 %v305
    %v345 = vpack.c.b16 %v330, %v329
    %v346 = vpack.c.b16 %v332, %v331
    %v347 = vpack.c.b16 %v334, %v333
    %v348 = vpack.c.b16 %v336, %v335
    %v349 = vpack.c.b16 %v338, %v337
    %v350 = vpack.c.b16 %v340, %v339
    %v351 = vpack.c.b16 %v342, %v341
    %v352 = vpack.c.b16 %v344, %v343
    %361 = vmatprep.subr.bf16.mxu0 0
    %362 = vmatpush1.bf16.msra.mxu0 %v345
    %363 = vmatprep.subr.bf16.mxu0 0
    %364 = vmatpush1.bf16.msra.mxu0 %v346
    %365 = vmatprep.subr.bf16.mxu0 0
    %366 = vmatpush1.bf16.msra.mxu0 %v347
    %367 = vmatprep.subr.bf16.mxu0 0
    %368 = vmatpush1.bf16.msra.mxu0 %v348
    %369 = vmatprep.subr.bf16.mxu0 0
    %370 = vmatpush1.bf16.msra.mxu0 %v349
    %371 = vmatprep.subr.bf16.mxu0 0
    %372 = vmatpush1.bf16.msra.mxu0 %v350
    %373 = vmatprep.subr.bf16.mxu0 0
    %374 = vmatpush1.bf16.msra.mxu0 %v351
    %375 = vmatprep.subr.bf16.mxu0 0
    %376 = vmatpush1.bf16.msra.mxu0 %v352
    %377 = vmatprep.subr.bf16.mxu0 0
    %378 = vmatpush1.bf16.msra.mxu0 0
    %379 = vmatprep.subr.bf16.mxu0 0
    %380 = vmatpush1.bf16.msra.mxu0 0
    %381 = vmatprep.subr.bf16.mxu0 0
    %382 = vmatpush1.bf16.msra.mxu0 0
    %383 = vmatprep.subr.bf16.mxu0 0
    %384 = vmatpush1.bf16.msra.mxu0 0
    %385 = vmatprep.subr.bf16.mxu0 0
    %386 = vmatpush1.bf16.msra.mxu0 0
    %387 = vmatprep.subr.bf16.mxu0 0
    %388 = vmatpush1.bf16.msra.mxu0 0
    %389 = vmatprep.subr.bf16.mxu0 0
    %390 = vmatpush1.bf16.msra.mxu0 0
    %391 = vmatprep.subr.bf16.mxu0 0
    %392 = vmatpush1.bf16.msra.mxu0 0
    %393 = vmatprep.mubr.bf16.mxu0 0
    %394 = vmatmul.mubr.bf16.gmra.mrb[0].mxu0 %v289
    %v395 = vpop.f32.mrb[0].mxu0
    %v396 = vadd.f32 %v311, %v395
    %v397 = vpop.f32.mrb[0].mxu0
    %v398 = vpop.f32.mrb[0].mxu0
    %v399 = vpop.f32.mrb[0].mxu0
    %400 = vdwg.mxu0
    %401 = vst [vmem:[#allocation8] sm:$0xff] %v396
    // Predicated region
    $region34: #{tpu_custom_call.1} parent=1 // pred_check
      _
    $region35: #{tpu_custom_call.1} parent=1 // pred_check_branch
      %403 = sbr.rel (0) target = $region37
    $region36: #{tpu_custom_call.1} parent=1 // pred_region
      %s405 = ssub.s32 128, 128
      %406 = vsyncadd [#allocation4], %s405
      %s408 = sshll.u32 [#allocation8], 4
      %s409 = int_to_ptr.vmem [resolvable:$true] %s408
      %411 = dma.vmem_to_hbm [thread:$0]  %s409, 128, %s5, [#allocation4]
    $region37: #{tpu_custom_call.1} parent=1 // pred_fallthru
      _
    // Predicated region
    $region38: #{tpu_custom_call.1} parent=1 // pred_check
      _
    $region39: #{tpu_custom_call.1} parent=1 // pred_check_branch
      %413 = sbr.rel (0) target = $region41
    $region40: #{tpu_custom_call.1} parent=1 // pred_region
      %414 = dma.done [#allocation4], 128
    $region41: #{tpu_custom_call.1} parent=1 // pred_fallthru
      _
    %415 = vsyncpa [#allocation3], 1
    %416 = vsyncpa [#allocation6], 1
    %417 = vsyncpa [#allocation4], 1

// kernel: tpu_custom_call.1
$region0: #{tpu_custom_call.1}
  #allocation0 [shape = 'u32[]', space=smem, size = 0x4, offset = 0x4, fixed_abs, tag = 'smem constant byte address 0x4 - core index']
  #allocation1 [shape = 'u32[144,128]{1,0:T(1,128)}', space=vmem, size = 0x12000, scoped, tag = 'internal scratch']
  %s0 = inlined_call_operand.hbm [shape: bf16[8,128], index: 0, kind: input, shape index: {}]
  %s1 = inlined_call_operand.hbm [shape: bf16[2,128,128], index: 1, kind: input, shape index: {}]
  %s2 = inlined_call_operand.vmem [shape: f32[2,1,128], index: 2, kind: input, shape index: {}]
  %s3 = inlined_call_operand.hbm [shape: bf16[128,128], index: 3, kind: input, shape index: {}]
  %s4 = inlined_call_operand.vmem [shape: f32[1,128], index: 4, kind: input, shape index: {}]
  %s5 = inlined_call_operand.hbm [shape: f32[8,128], index: 5, kind: output, shape index: {}]
  %s6 = sld [smem:[#allocation0]]
  $region42: #{tpu_custom_call.1} parent=0
    _
  %s8 = ssub.s32 1, %s6
  %s9 = scalar_select 0, %s8, %s6
  $region1: #{tpu_custom_call.1} parent=0
    #allocation2 [shape = 'u8[2048]{0}', space=vmem, size = 0x800, scoped, tag = 'input window, operand 0, single buffered']
    #allocation3 [shape = 's32[1]{0}', space=sflag, size = 0x4, scoped, tag = 'scoped memory for tpu_custom_call.1']
    #allocation4 [shape = 's32[1]{0}', space=sflag, size = 0x4, scoped, tag = 'scoped memory for tpu_custom_call.1']
    #allocation5 [shape = 'u8[65536]{0}', space=vmem, size = 0x10000, scoped, tag = 'input window, operand 1, single buffered']
    #allocation6 [shape = 's32[1]{0}', space=sflag, size = 0x4, scoped, tag = 'scoped memory for tpu_custom_call.1']
    #allocation7 [shape = 'u8[32768]{0}', space=vmem, size = 0x8000, scoped, tag = 'input window, operand 3, single buffered']
    #allocation8 [shape = 'u8[4096]{0}', space=vmem, size = 0x1000, scoped, tag = 'output window, operand 0, single buffered']
    %10 = vsyncpa [#allocation3], 0
    %11 = vsyncpa [#allocation6], 0
    %12 = vsyncpa [#allocation4], 0
    // Predicated region
    $region2: #{tpu_custom_call.1} parent=1 // pred_check
      _
    $region3: #{tpu_custom_call.1} parent=1 // pred_check_branch
      %14 = sbr.rel (0) target = $region5
    $region4: #{tpu_custom_call.1} parent=1 // pred_region
      %s16 = ssub.s32 64, 64
      %17 = vsyncadd [#allocation3], %s16
      %s19 = sshll.u32 [#allocation2], 4
      %s20 = int_to_ptr.vmem [resolvable:$true] %s19
      %22 = dma.hbm_to_vmem [thread:$0]  %s0, 64, %s20, [#allocation3]
    $region5: #{tpu_custom_call.1} parent=1 // pred_fallthru
      _
    // Predicated region
    $region6: #{tpu_custom_call.1} parent=1 // pred_check
      _
    $region7: #{tpu_custom_call.1} parent=1 // pred_check_branch
      %24 = sbr.rel (0) target = $region9
    $region8: #{tpu_custom_call.1} parent=1 // pred_region
      %s26 = ssub.s32 2048, 2048
      %27 = vsyncadd [#allocation6], %s26
      %s28 = sshll.u32 [#allocation5], 4
      %s29 = int_to_ptr.vmem [resolvable:$true] %s28
      %34 = dma.hbm_to_vmem [thread:$0]  %s1, 2048, %s29, [#allocation6], 64, 64, 4
    $region9: #{tpu_custom_call.1} parent=1 // pred_fallthru
      _
    // Predicated region
    $region10: #{tpu_custom_call.1} parent=1 // pred_check
      _
    $region11: #{tpu_custom_call.1} parent=1 // pred_check_branch
      %36 = sbr.rel (0) target = $region13
    $region12: #{tpu_custom_call.1} parent=1 // pred_region
      _
    $region13: #{tpu_custom_call.1} parent=1 // pred_fallthru
      _
    // Predicated region
    $region14: #{tpu_custom_call.1} parent=1 // pred_check
      _
    $region15: #{tpu_custom_call.1} parent=1 // pred_check_branch
      %38 = sbr.rel (0) target = $region17
    $region16: #{tpu_custom_call.1} parent=1 // pred_region
      %s40 = ssub.s32 1024, 1024
      %41 = vsyncadd [#allocation6], %s40
      %s42 = sshll.u32 [#allocation7], 4
      %s43 = int_to_ptr.vmem [resolvable:$true] %s42
      %48 = dma.hbm_to_vmem [thread:$0]  %s3, 1024, %s43, [#allocation6], 64, 64, 4
    $region17: #{tpu_custom_call.1} parent=1 // pred_fallthru
      _
    // Predicated region
    $region18: #{tpu_custom_call.1} parent=1 // pred_check
      _
    $region19: #{tpu_custom_call.1} parent=1 // pred_check_branch
      %50 = sbr.rel (0) target = $region21
    $region20: #{tpu_custom_call.1} parent=1 // pred_region
      _
    $region21: #{tpu_custom_call.1} parent=1 // pred_fallthru
      _
    // Predicated region
    $region22: #{tpu_custom_call.1} parent=1 // pred_check
      _
    $region23: #{tpu_custom_call.1} parent=1 // pred_check_branch
      %52 = sbr.rel (0) target = $region25
    $region24: #{tpu_custom_call.1} parent=1 // pred_region
      %53 = dma.done [#allocation3], 64
    $region25: #{tpu_custom_call.1} parent=1 // pred_fallthru
      _
    // Predicated region
    $region26: #{tpu_custom_call.1} parent=1 // pred_check
      _
    $region27: #{tpu_custom_call.1} parent=1 // pred_check_branch
      %55 = sbr.rel (0) target = $region29
    $region28: #{tpu_custom_call.1} parent=1 // pred_region
      %56 = dma.done [#allocation6], 2048
    $region29: #{tpu_custom_call.1} parent=1 // pred_fallthru
      _
    // Predicated region
    $region30: #{tpu_custom_call.1} parent=1 // pred_check
      _
    $region31: #{tpu_custom_call.1} parent=1 // pred_check_branch
      %58 = sbr.rel (0) target = $region33
    $region32: #{tpu_custom_call.1} parent=1 // pred_region
      %59 = dma.done [#allocation6], 1024
    $region33: #{tpu_custom_call.1} parent=1 // pred_fallthru
      _
    %v61 = vld [vmem:[#allocation2] sm:$0xf]
    %v62 = vld [vmem:[#allocation5] sm:$0xf]
    %v63 = vld [vmem:[#allocation5 + $0x4] sm:$0xf]
    %v64 = vld [vmem:[#allocation5 + $0x8] sm:$0xf]
    %v65 = vld [vmem:[#allocation5 + $0xc] sm:$0xf]
    %v66 = vld [vmem:[#allocation5 + $0x10] sm:$0xf]
    %v67 = vld [vmem:[#allocation5 + $0x14] sm:$0xf]
    %v68 = vld [vmem:[#allocation5 + $0x18] sm:$0xf]
    %v69 = vld [vmem:[#allocation5 + $0x1c] sm:$0xf]
    %v70 = vld [vmem:[#allocation5 + $0x20] sm:$0xf]
    %v71 = vld [vmem:[#allocation5 + $0x24] sm:$0xf]
    %v72 = vld [vmem:[#allocation5 + $0x28] sm:$0xf]
    %v73 = vld [vmem:[#allocation5 + $0x2c] sm:$0xf]
    %v74 = vld [vmem:[#allocation5 + $0x30] sm:$0xf]
    %v75 = vld [vmem:[#allocation5 + $0x34] sm:$0xf]
    %v76 = vld [vmem:[#allocation5 + $0x38] sm:$0xf]
    %v77 = vld [vmem:[#allocation5 + $0x3c] sm:$0xf]
    %v78 = vld [vmem:[%s2] sm:$0x1]
    %v80 = vlaneseq
    %v81 = vshrl.u32 %v80, 7
    %v82 = vsub.s32 0, %v81
    %v83 = vrot.slane %v78, %v82
    %v101 = vunpack.c.l.b16 %v62
    %v102 = vunpack.c.l.b16 %v63
    %v103 = vunpack.c.l.b16 %v64
    %v104 = vunpack.c.l.b16 %v65
    %v105 = vunpack.c.l.b16 %v66
    %v106 = vunpack.c.l.b16 %v67
    %v107 = vunpack.c.l.b16 %v68
    %v108 = vunpack.c.l.b16 %v69
    %v109 = vunpack.c.l.b16 %v70
    %v110 = vunpack.c.l.b16 %v71
    %v111 = vunpack.c.l.b16 %v72
    %v112 = vunpack.c.l.b16 %v73
    %v113 = vunpack.c.l.b16 %v74
    %v114 = vunpack.c.l.b16 %v75
    %v115 = vunpack.c.l.b16 %v76
    %v116 = vunpack.c.l.b16 %v77
    %v117 = vpack.c.b16 %v102, %v101
    %v118 = vpack.c.b16 %v104, %v103
    %v119 = vpack.c.b16 %v106, %v105
    %v120 = vpack.c.b16 %v108, %v107
    %v121 = vpack.c.b16 %v110, %v109
    %v122 = vpack.c.b16 %v112, %v111
    %v123 = vpack.c.b16 %v114, %v113
    %v124 = vpack.c.b16 %v116, %v115
    %133 = vmatprep.subr.bf16.mxu0 0
    %134 = vmatpush1.bf16.msra.mxu0 %v117
    %135 = vmatprep.subr.bf16.mxu0 0
    %136 = vmatpush1.bf16.msra.mxu0 %v118
    %137 = vmatprep.subr.bf16.mxu0 0
    %138 = vmatpush1.bf16.msra.mxu0 %v119
    %139 = vmatprep.subr.bf16.mxu0 0
    %140 = vmatpush1.bf16.msra.mxu0 %v120
    %141 = vmatprep.subr.bf16.mxu0 0
    %142 = vmatpush1.bf16.msra.mxu0 %v121
    %143 = vmatprep.subr.bf16.mxu0 0
    %144 = vmatpush1.bf16.msra.mxu0 %v122
    %145 = vmatprep.subr.bf16.mxu0 0
    %146 = vmatpush1.bf16.msra.mxu0 %v123
    %147 = vmatprep.subr.bf16.mxu0 0
    %148 = vmatpush1.bf16.msra.mxu0 %v124
    %149 = vmatprep.subr.bf16.mxu0 0
    %150 = vmatpush1.bf16.msra.mxu0 0
    %151 = vmatprep.subr.bf16.mxu0 0
    %152 = vmatpush1.bf16.msra.mxu0 0
    %153 = vmatprep.subr.bf16.mxu0 0
    %154 = vmatpush1.bf16.msra.mxu0 0
    %155 = vmatprep.subr.bf16.mxu0 0
    %156 = vmatpush1.bf16.msra.mxu0 0
    %157 = vmatprep.subr.bf16.mxu0 0
    %158 = vmatpush1.bf16.msra.mxu0 0
    %159 = vmatprep.subr.bf16.mxu0 0
    %160 = vmatpush1.bf16.msra.mxu0 0
    %161 = vmatprep.subr.bf16.mxu0 0
    %162 = vmatpush1.bf16.msra.mxu0 0
    %163 = vmatprep.subr.bf16.mxu0 0
    %164 = vmatpush1.bf16.msra.mxu0 0
    %165 = vmatprep.mubr.bf16.mxu0 0
    %166 = vmatmul.mubr.bf16.gmra.mrb[0].mxu0 %v61
    %v167 = vpop.f32.mrb[0].mxu0
    %v168 = vadd.f32 %v83, %v167
    %v169 = vpop.f32.mrb[0].mxu0
    %v170 = vpop.f32.mrb[0].mxu0
    %v171 = vpop.f32.mrb[0].mxu0
    %172 = vdwg.mxu0
    %v173 = vmax.f32 %v168, 0.0
    %v174 = vpack.c.bf16 %v173, %v173
    %s175 = scalar_lea.vmem [#allocation5], 64
    %v176 = vld [vmem:[%s175] sm:$0xf]
    %v177 = vld [vmem:[%s175 + $0x4] sm:$0xf]
    %v178 = vld [vmem:[%s175 + $0x8] sm:$0xf]
    %v179 = vld [vmem:[%s175 + $0xc] sm:$0xf]
    %v180 = vld [vmem:[%s175 + $0x10] sm:$0xf]
    %v181 = vld [vmem:[%s175 + $0x14] sm:$0xf]
    %v182 = vld [vmem:[%s175 + $0x18] sm:$0xf]
    %v183 = vld [vmem:[%s175 + $0x1c] sm:$0xf]
    %v184 = vld [vmem:[%s175 + $0x20] sm:$0xf]
    %v185 = vld [vmem:[%s175 + $0x24] sm:$0xf]
    %v186 = vld [vmem:[%s175 + $0x28] sm:$0xf]
    %v187 = vld [vmem:[%s175 + $0x2c] sm:$0xf]
    %v188 = vld [vmem:[%s175 + $0x30] sm:$0xf]
    %v189 = vld [vmem:[%s175 + $0x34] sm:$0xf]
    %v190 = vld [vmem:[%s175 + $0x38] sm:$0xf]
    %v191 = vld [vmem:[%s175 + $0x3c] sm:$0xf]
    %s192 = scalar_lea.vmem %s2, 1
    %v193 = vld [vmem:[%s192] sm:$0x1]
    %v195 = vlaneseq
    %v196 = vshrl.u32 %v195, 7
    %v197 = vsub.s32 0, %v196
    %v198 = vrot.slane %v193, %v197
    %v216 = vunpack.c.l.b16 %v176
    %v217 = vunpack.c.l.b16 %v177
    %v218 = vunpack.c.l.b16 %v178
    %v219 = vunpack.c.l.b16 %v179
    %v220 = vunpack.c.l.b16 %v180
    %v221 = vunpack.c.l.b16 %v181
    %v222 = vunpack.c.l.b16 %v182
    %v223 = vunpack.c.l.b16 %v183
    %v224 = vunpack.c.l.b16 %v184
    %v225 = vunpack.c.l.b16 %v185
    %v226 = vunpack.c.l.b16 %v186
    %v227 = vunpack.c.l.b16 %v187
    %v228 = vunpack.c.l.b16 %v188
    %v229 = vunpack.c.l.b16 %v189
    %v230 = vunpack.c.l.b16 %v190
    %v231 = vunpack.c.l.b16 %v191
    %v232 = vpack.c.b16 %v217, %v216
    %v233 = vpack.c.b16 %v219, %v218
    %v234 = vpack.c.b16 %v221, %v220
    %v235 = vpack.c.b16 %v223, %v222
    %v236 = vpack.c.b16 %v225, %v224
    %v237 = vpack.c.b16 %v227, %v226
    %v238 = vpack.c.b16 %v229, %v228
    %v239 = vpack.c.b16 %v231, %v230
    %248 = vmatprep.subr.bf16.mxu0 0
    %249 = vmatpush1.bf16.msra.mxu0 %v232
    %250 = vmatprep.subr.bf16.mxu0 0
    %251 = vmatpush1.bf16.msra.mxu0 %v233
    %252 = vmatprep.subr.bf16.mxu0 0
    %253 = vmatpush1.bf16.msra.mxu0 %v234
    %254 = vmatprep.subr.bf16.mxu0 0
    %255 = vmatpush1.bf16.msra.mxu0 %v235
    %256 = vmatprep.subr.bf16.mxu0 0
    %257 = vmatpush1.bf16.msra.mxu0 %v236
    %258 = vmatprep.subr.bf16.mxu0 0
    %259 = vmatpush1.bf16.msra.mxu0 %v237
    %260 = vmatprep.subr.bf16.mxu0 0
    %261 = vmatpush1.bf16.msra.mxu0 %v238
    %262 = vmatprep.subr.bf16.mxu0 0
    %263 = vmatpush1.bf16.msra.mxu0 %v239
    %264 = vmatprep.subr.bf16.mxu0 0
    %265 = vmatpush1.bf16.msra.mxu0 0
    %266 = vmatprep.subr.bf16.mxu0 0
    %267 = vmatpush1.bf16.msra.mxu0 0
    %268 = vmatprep.subr.bf16.mxu0 0
    %269 = vmatpush1.bf16.msra.mxu0 0
    %270 = vmatprep.subr.bf16.mxu0 0
    %271 = vmatpush1.bf16.msra.mxu0 0
    %272 = vmatprep.subr.bf16.mxu0 0
    %273 = vmatpush1.bf16.msra.mxu0 0
    %274 = vmatprep.subr.bf16.mxu0 0
    %275 = vmatpush1.bf16.msra.mxu0 0
    %276 = vmatprep.subr.bf16.mxu0 0
    %277 = vmatpush1.bf16.msra.mxu0 0
    %278 = vmatprep.subr.bf16.mxu0 0
    %279 = vmatpush1.bf16.msra.mxu0 0
    %280 = vmatprep.mubr.bf16.mxu0 0
    %281 = vmatmul.mubr.bf16.gmra.mrb[0].mxu0 %v174
    %v282 = vpop.f32.mrb[0].mxu0
    %v283 = vadd.f32 %v198, %v282
    %v284 = vpop.f32.mrb[0].mxu0
    %v285 = vpop.f32.mrb[0].mxu0
    %v286 = vpop.f32.mrb[0].mxu0
    %287 = vdwg.mxu0
    %v288 = vmax.f32 %v283, 0.0
    %v289 = vpack.c.bf16 %v288, %v288
    %v290 = vld [vmem:[#allocation7] sm:$0xf]
    %v291 = vld [vmem:[#allocation7 + $0x4] sm:$0xf]
    %v292 = vld [vmem:[#allocation7 + $0x8] sm:$0xf]
    %v293 = vld [vmem:[#allocation7 + $0xc] sm:$0xf]
    %v294 = vld [vmem:[#allocation7 + $0x10] sm:$0xf]
    %v295 = vld [vmem:[#allocation7 + $0x14] sm:$0xf]
    %v296 = vld [vmem:[#allocation7 + $0x18] sm:$0xf]
    %v297 = vld [vmem:[#allocation7 + $0x1c] sm:$0xf]
    %v298 = vld [vmem:[#allocation7 + $0x20] sm:$0xf]
    %v299 = vld [vmem:[#allocation7 + $0x24] sm:$0xf]
    %v300 = vld [vmem:[#allocation7 + $0x28] sm:$0xf]
    %v301 = vld [vmem:[#allocation7 + $0x2c] sm:$0xf]
    %v302 = vld [vmem:[#allocation7 + $0x30] sm:$0xf]
    %v303 = vld [vmem:[#allocation7 + $0x34] sm:$0xf]
    %v304 = vld [vmem:[#allocation7 + $0x38] sm:$0xf]
    %v305 = vld [vmem:[#allocation7 + $0x3c] sm:$0xf]
    %v306 = vld [vmem:[%s4] sm:$0x1]
    %v308 = vlaneseq
    %v309 = vshrl.u32 %v308, 7
    %v310 = vsub.s32 0, %v309
    %v311 = vrot.slane %v306, %v310
    %v329 = vunpack.c.l.b16 %v290
    %v330 = vunpack.c.l.b16 %v291
    %v331 = vunpack.c.l.b16 %v292
    %v332 = vunpack.c.l.b16 %v293
    %v333 = vunpack.c.l.b16 %v294
    %v334 = vunpack.c.l.b16 %v295
    %v335 = vunpack.c.l.b16 %v296
    %v336 = vunpack.c.l.b16 %v297
    %v337 = vunpack.c.l.b16 %v298
    %v338 = vunpack.c.l.b16 %v299
    %v339 = vunpack.c.l.b16 %v300
    %v340 = vunpack.c.l.b16 %v301
    %v341 = vunpack.c.l.b16 %v302
    %v342 = vunpack.c.l.b16 %v303
    %v343 = vunpack.c.l.b16 %v304
    %v344 = vunpack.c.l.b16 %v305
    %v345 = vpack.c.b16 %v330, %v329
    %v346 = vpack.c.b16 %v332, %v331
    %v347 = vpack.c.b16 %v334, %v333
    %v348 = vpack.c.b16 %v336, %v335
    %v349 = vpack.c.b16 %v338, %v337
    %v350 = vpack.c.b16 %v340, %v339
    %v351 = vpack.c.b16 %v342, %v341
    %v352 = vpack.c.b16 %v344, %v343
    %361 = vmatprep.subr.bf16.mxu0 0
    %362 = vmatpush1.bf16.msra.mxu0 %v345
    %363 = vmatprep.subr.bf16.mxu0 0
    %364 = vmatpush1.bf16.msra.mxu0 %v346
    %365 = vmatprep.subr.bf16.mxu0 0
    %366 = vmatpush1.bf16.msra.mxu0 %v347
    %367 = vmatprep.subr.bf16.mxu0 0
    %368 = vmatpush1.bf16.msra.mxu0 %v348
    %369 = vmatprep.subr.bf16.mxu0 0
    %370 = vmatpush1.bf16.msra.mxu0 %v349
    %371 = vmatprep.subr.bf16.mxu0 0
    %372 = vmatpush1.bf16.msra.mxu0 %v350
    %373 = vmatprep.subr.bf16.mxu0 0
    %374 = vmatpush1.bf16.msra.mxu0 %v351
    %375 = vmatprep.subr.bf16.mxu0 0
    %376 = vmatpush1.bf16.msra.mxu0 %v352
    %377 = vmatprep.subr.bf16.mxu0 0
    %378 = vmatpush1.bf16.msra.mxu0 0
    %379 = vmatprep.subr.bf16.mxu0 0
    %380 = vmatpush1.bf16.msra.mxu0 0
    %381 = vmatprep.subr.bf16.mxu0 0
    %382 = vmatpush1.bf16.msra.mxu0 0
    %383 = vmatprep.subr.bf16.mxu0 0
    %384 = vmatpush1.bf16.msra.mxu0 0
    %385 = vmatprep.subr.bf16.mxu0 0
    %386 = vmatpush1.bf16.msra.mxu0 0
    %387 = vmatprep.subr.bf16.mxu0 0
    %388 = vmatpush1.bf16.msra.mxu0 0
    %389 = vmatprep.subr.bf16.mxu0 0
    %390 = vmatpush1.bf16.msra.mxu0 0
    %391 = vmatprep.subr.bf16.mxu0 0
    %392 = vmatpush1.bf16.msra.mxu0 0
    %393 = vmatprep.mubr.bf16.mxu0 0
    %394 = vmatmul.mubr.bf16.gmra.mrb[0].mxu0 %v289
    %v395 = vpop.f32.mrb[0].mxu0
    %v396 = vadd.f32 %v311, %v395
    %v397 = vpop.f32.mrb[0].mxu0
    %v398 = vpop.f32.mrb[0].mxu0
    %v399 = vpop.f32.mrb[0].mxu0
    %400 = vdwg.mxu0
    %401 = vst [vmem:[#allocation8] sm:$0xff] %v396
    // Predicated region
    $region34: #{tpu_custom_call.1} parent=1 // pred_check
      _
    $region35: #{tpu_custom_call.1} parent=1 // pred_check_branch
      %403 = sbr.rel (0) target = $region37
    $region36: #{tpu_custom_call.1} parent=1 // pred_region
      %s405 = ssub.s32 128, 128
      %406 = vsyncadd [#allocation4], %s405
      %s408 = sshll.u32 [#allocation8], 4
      %s409 = int_to_ptr.vmem [resolvable:$true] %s408
      %411 = dma.vmem_to_hbm [thread:$0]  %s409, 128, %s5, [#allocation4]
    $region37: #{tpu_custom_call.1} parent=1 // pred_fallthru
      _
    // Predicated region
    $region38: #{tpu_custom_call.1} parent=1 // pred_check
      _
    $region39: #{tpu_custom_call.1} parent=1 // pred_check_branch
      %413 = sbr.rel (0) target = $region41
    $region40: #{tpu_custom_call.1} parent=1 // pred_region
      %414 = dma.done [#allocation4], 128
    $region41: #{tpu_custom_call.1} parent=1 // pred_fallthru
      _
    %415 = vsyncpa [#allocation3], 1
    %416 = vsyncpa [#allocation6], 1
    %417 = vsyncpa [#allocation4], 1

</llo_original>
